<compile_context>
chip_gen: v6e
topology: v6e:2x2x1
jax: 0.10.0
libtpu: 0.0.40
codegen_flags: <defaults>
</compile_context>

<pallas_src>
import functools
import math

import jax
import jax.numpy as jnp
from jax.experimental import pallas as pl
from jax.experimental.pallas import tpu as pltpu


def _embedding_kernel(ids_ref, table_ref, out_ref, *, scale):
    # ids_ref:   (TILE_N, 1) int32   -- token ids for this tile
    # table_ref: (V, D)      float32 -- full embedding table (resident in VMEM)
    # out_ref:   (TILE_N, D) float32
    ids = ids_ref[...]                                    # (TILE_N, 1)
    tile_n = ids.shape[0]
    vocab = table_ref.shape[0]

    # Scaled one-hot (TILE_N, V): the sqrt(D) scale is fused into the select so no
    # (TILE_N, D) VPU multiply is needed after the matmul. The iota/compare is VPU
    # filler that hides under the MXU push + output store (do not hoist to wrapper).
    col = jax.lax.broadcasted_iota(jnp.int32, (tile_n, vocab), 1)
    onehot = jnp.where(col == ids, scale, 0.0).astype(table_ref.dtype)

    # NOTE: out-of-range ids produce an all-zero row (PyTorch would raise); inputs
    # are assumed valid, matching the original kernel's contract.
    out_ref[...] = jnp.dot(
        onehot, table_ref[...], preferred_element_type=jnp.float32
    ).astype(out_ref.dtype)


def _round_up(x, m):
    return (x + m - 1) // m * m


def _pick_tile(n, tile_n):
    """Effective tile size: multiple of 8, prefers a divisor of n (no padding)."""
    tile_n = max(8, (tile_n // 8) * 8)
    if n <= tile_n:
        return _round_up(n, 8)
    if n % tile_n == 0:
        return tile_n
    # Largest multiple of 8 that is <= tile_n and divides n (avoids the padded
    # output + post-kernel slice copy). Falls back to padding if none exists.
    t = tile_n
    while t >= 8:
        if n % t == 0:
            return t
        t -= 8
    return tile_n


def self_embedding(x, table, *, tile_n=256):
    """x: (B, S) int32 token ids; table: (V, D) float32 embedding weights.

    Returns (B, S, D) float32 == embedding(x) * sqrt(D).
    """
    B, S = x.shape
    V, D = table.shape
    N = B * S

    tile_n_eff = _pick_tile(N, tile_n)
    Np = _round_up(N, tile_n_eff)
    n_pad = Np - N

    ids_flat = x.reshape(N).astype(jnp.int32)
    if n_pad:
        ids_flat = jnp.pad(ids_flat, (0, n_pad))
    ids_2d = ids_flat.reshape(Np, 1)

    scale = math.sqrt(float(D))

    # VMEM budget: resident table + double-buffered ids/out tiles (+2x margin).
    # Keeps us honest on v7x (64 MiB physical VMEM, 32 MiB default scoped).
    table_bytes = V * D * 4
    out_tile_bytes = tile_n_eff * D * 4
    ids_tile_bytes = tile_n_eff * 4
    needed = 2 * (table_bytes + out_tile_bytes + ids_tile_bytes)
    vmem_limit = min(64 * 1024 * 1024, max(2 * needed, 16 * 1024 * 1024))

    # TODO(synk): if V*D*4 grows beyond ~20-24 MiB (v7x), add a second grid axis
    # tiling D (table block (V, tile_d)), or switch to a scalar-prefetched
    # per-row DMA gather with memory_space=pl.ANY instead of one-hot @ table.

    out = pl.pallas_call(
        functools.partial(_embedding_kernel, scale=scale),
        out_shape=jax.ShapeDtypeStruct((Np, D), jnp.float32),
        grid_spec=pltpu.PrefetchScalarGridSpec(
            num_scalar_prefetch=0,
            grid=(Np // tile_n_eff,),
            in_specs=[
                pl.BlockSpec((tile_n_eff, 1), lambda i: (i, 0)),   # ids tile
                pl.BlockSpec((V, D), lambda i: (0, 0)),            # full table
            ],
            out_specs=pl.BlockSpec((tile_n_eff, D), lambda i: (i, 0)),
        ),
        compiler_params=pltpu.CompilerParams(
            dimension_semantics=("parallel",),   # lets v7x shard the grid across TCs
            vmem_limit_bytes=vmem_limit,
        ),
    )(ids_2d, table)

    if n_pad:
        out = out[:N]
    return out.reshape(B, S, D)


if __name__ == "__main__":
    # Deterministic parameters / inputs (synthetic, no checkpoint).
    dict_length = 64
    embedding_dim = 128
    batch, seq = 2, 8

    key = jax.random.PRNGKey(0)
    k_tab, k_ids = jax.random.split(key)
    # nn.Embedding default init: N(0, 1)
    table = jax.random.normal(k_tab, (dict_length, embedding_dim), jnp.float32)
    x = jax.random.randint(k_ids, (batch, seq), 0, dict_length, jnp.int32)

    out = self_embedding(x, table)
    out = jax.block_until_ready(out)

    # Reference check against plain-JAX gather.
    ref = table[x] * math.sqrt(embedding_dim)
    assert out.shape == (batch, seq, embedding_dim)
    assert jnp.allclose(out, ref, atol=1e-5, rtol=1e-5)

    print("KERNEL_OK")
</pallas_src>

<mosaic_0001>
module attributes {stable_mosaic.version = 11 : i64} {
  func.func @_embedding_kernel(%arg0: i32, %arg1: memref<16x1xi32, #tpu.memory_space<vmem>>, %arg2: memref<64x128xf32, #tpu.memory_space<vmem>>, %arg3: memref<16x128xf32, #tpu.memory_space<vmem>>) attributes {dimension_semantics = [#tpu.dimension_semantics<parallel>], iteration_bounds = array<i64: 1>, scalar_prefetch = 0 : i64, scratch_operands = 0 : i64, tpu.core_type = #tpu.core_type<tc>, window_params = [{transform_indices = @transform_0, window_bounds = array<i64: 16, 1>}, {pipeline_mode = #tpu.pipeline_mode<synchronous>, transform_indices = @transform_1, window_bounds = array<i64: 64, 128>}, {transform_indices = @transform_2, window_bounds = array<i64: 16, 128>}]} {
    %c0 = arith.constant 0 : index
    %c0_0 = arith.constant 0 : index
    %0 = vector.load %arg1[%c0, %c0_0] : memref<16x1xi32, #tpu.memory_space<vmem>>, vector<16x1xi32>
    %1 = tpu.iota {dimensions = array<i32: 1>} : vector<16x64xi32>
    %2 = vector.broadcast %0 : vector<16x1xi32> to vector<16x64xi32>
    %3 = arith.cmpi eq, %1, %2 : vector<16x64xi32>
    %cst = arith.constant 11.3137083 : f32
    %cst_1 = arith.constant 0.000000e+00 : f32
    %4 = vector.broadcast %cst : f32 to vector<16x64xf32>
    %5 = vector.broadcast %cst_1 : f32 to vector<16x64xf32>
    %6 = arith.select %3, %4, %5 : vector<16x64xi1>, vector<16x64xf32>
    %c0_2 = arith.constant 0 : index
    %c0_3 = arith.constant 0 : index
    %7 = vector.load %arg2[%c0_2, %c0_3] : memref<64x128xf32, #tpu.memory_space<vmem>>, vector<64x128xf32>
    %cst_4 = arith.constant dense<0.000000e+00> : vector<16x128xf32>
    %8 = tpu.matmul %6, %7, %cst_4 {dimension_numbers = #tpu.dot_dimension_numbers<[1], [0], [0], [1], [0, 0, 1, 1], [], []>} : vector<16x64xf32>, vector<64x128xf32>, vector<16x128xf32> -> vector<16x128xf32>
    %c0_5 = arith.constant 0 : index
    %c0_6 = arith.constant 0 : index
    %9 = vector.load %arg3[%c0_5, %c0_6] : memref<16x128xf32, #tpu.memory_space<vmem>>, vector<16x128xf32>
    tpu.vector_store %arg3[%c0_5, %c0_6], %8 {strides = array<i32>} : memref<16x128xf32, #tpu.memory_space<vmem>>, vector<16x128xf32>,
    return
  }
  func.func @transform_0(%arg0: i32) -> (i32, i32) {
    %c0_i32 = arith.constant 0 : i32
    %c0_i32_0 = arith.constant 0 : i32
    return %arg0, %c0_i32 : i32, i32
  }
  func.func @transform_1(%arg0: i32) -> (i32, i32) {
    %c0_i32 = arith.constant 0 : i32
    %c0_i32_0 = arith.constant 0 : i32
    %c0_i32_1 = arith.constant 0 : i32
    return %c0_i32, %c0_i32_0 : i32, i32
  }
  func.func @transform_2(%arg0: i32) -> (i32, i32) {
    %c0_i32 = arith.constant 0 : i32
    %c0_i32_0 = arith.constant 0 : i32
    return %arg0, %c0_i32 : i32, i32
  }
}

</mosaic_0001>

<llo_original>
// kernel: tpu_custom_call.1
$region0: #{tpu_custom_call.1}
  #allocation0 [shape = 'u32[]', space=smem, size = 0x4, offset = 0x4, fixed_abs, tag = 'smem constant byte address 0x4 - core index']
  #allocation1 [shape = 'u32[144,128]{1,0:T(1,128)}', space=vmem, size = 0x12000, scoped, tag = 'internal scratch']
  %s0 = inlined_call_operand.vmem [shape: s32[16,1], index: 0, kind: input, shape index: {}]
  %s1 = inlined_call_operand.hbm [shape: f32[64,128], index: 1, kind: input, shape index: {}]
  %s2 = inlined_call_operand.hbm [shape: f32[16,128], index: 2, kind: output, shape index: {}]
  %s3 = sld [smem:[#allocation0]]
  $region22: #{tpu_custom_call.1} parent=0
    _
  %s5 = ssub.s32 1, %s3
  %s6 = scalar_select 0, %s5, %s3
  $region1: #{tpu_custom_call.1} parent=0
    #allocation2 [shape = 'u8[32768]{0}', space=vmem, size = 0x8000, scoped, tag = 'input window, operand 1, single buffered']
    #allocation3 [shape = 's32[1]{0}', space=sflag, size = 0x4, scoped, tag = 'scoped memory for tpu_custom_call.1']
    #allocation4 [shape = 's32[1]{0}', space=sflag, size = 0x4, scoped, tag = 'scoped memory for tpu_custom_call.1']
    #allocation5 [shape = 'u8[8192]{0}', space=vmem, size = 0x2000, scoped, tag = 'output window, operand 0, single buffered']
    %7 = vsyncpa [#allocation3], 0
    %8 = vsyncpa [#allocation4], 0
    // Predicated region
    $region2: #{tpu_custom_call.1} parent=1 // pred_check
      _
    $region3: #{tpu_custom_call.1} parent=1 // pred_check_branch
      %10 = sbr.rel (0) target = $region5
    $region4: #{tpu_custom_call.1} parent=1 // pred_region
      _
    $region5: #{tpu_custom_call.1} parent=1 // pred_fallthru
      _
    // Predicated region
    $region6: #{tpu_custom_call.1} parent=1 // pred_check
      _
    $region7: #{tpu_custom_call.1} parent=1 // pred_check_branch
      %12 = sbr.rel (0) target = $region9
    $region8: #{tpu_custom_call.1} parent=1 // pred_region
      %s14 = ssub.s32 1024, 1024
      %15 = vsyncadd [#allocation3], %s14
      %s16 = sshll.u32 [#allocation2], 4
      %s17 = int_to_ptr.vmem [resolvable:$true] %s16
      %22 = dma.hbm_to_vmem [thread:$0]  %s1, 1024, %s17, [#allocation3], 128, 128, 8
    $region9: #{tpu_custom_call.1} parent=1 // pred_fallthru
      _
    // Predicated region
    $region10: #{tpu_custom_call.1} parent=1 // pred_check
      _
    $region11: #{tpu_custom_call.1} parent=1 // pred_check_branch
      %24 = sbr.rel (0) target = $region13
    $region12: #{tpu_custom_call.1} parent=1 // pred_region
      %25 = dma.done [#allocation3], 1024
    $region13: #{tpu_custom_call.1} parent=1 // pred_fallthru
      _
    %v26 = vld [vmem:[%s0] sm:$0xff]
    %v27 = vld [vmem:[%s0 + $0x8] sm:$0xff]
    %v28 = vlaneseq
    %v29 = vand.u32 %v28, 127
    %30 = vset.pattern.permute.xlu0 0
    %31 = vperm.xlu0 %30, %v26
    %v32 = vpop.permute.xlu0 %31
    %33 = vset.pattern.permute.xlu0 0
    %34 = vperm.xlu0 %33, %v27
    %v35 = vpop.permute.xlu0 %34
    %vm36 = vcmp.eq.s32.totalorder %v29, %v32
    %vm37 = vcmp.eq.s32.totalorder %v29, %v35
    %v38 = vsel %vm36, 11.313708, 0.0
    %v39 = vsel %vm37, 11.313708, 0.0
    %v40 = vld [vmem:[#allocation2] sm:$0xff]
    %v41 = vld [vmem:[#allocation2 + $0x8] sm:$0xff]
    %v42 = vld [vmem:[#allocation2 + $0x10] sm:$0xff]
    %v43 = vld [vmem:[#allocation2 + $0x18] sm:$0xff]
    %v44 = vld [vmem:[#allocation2 + $0x20] sm:$0xff]
    %v45 = vld [vmem:[#allocation2 + $0x28] sm:$0xff]
    %v46 = vld [vmem:[#allocation2 + $0x30] sm:$0xff]
    %v47 = vld [vmem:[#allocation2 + $0x38] sm:$0xff]
    %vm48 = vcmask 523264
    %v50 = vsel %vm48, %v38, 0
    %v53 = vsel %vm48, %v39, 0
    %55 = vmatprep.subr.mxu0 0.0
    %56 = vmatpush1.msra.mxu0 0.0
    %57 = vmatprep.subr.mxu0 0.0
    %58 = vmatpush1.msra.mxu0 0.0
    %59 = vmatprep.subr.mxu0 0.0
    %60 = vmatpush1.msra.mxu0 0.0
    %61 = vmatprep.subr.mxu0 0.0
    %62 = vmatpush1.msra.mxu0 0.0
    %63 = vmatprep.subr.mxu0 0.0
    %64 = vmatpush1.msra.mxu0 0.0
    %65 = vmatprep.subr.mxu0 0.0
    %66 = vmatpush1.msra.mxu0 0.0
    %67 = vmatprep.subr.mxu0 0.0
    %68 = vmatpush1.msra.mxu0 0.0
    %69 = vmatprep.subr.mxu0 0.0
    %70 = vmatpush1.msra.mxu0 0.0
    %71 = vmatprep.subr.mxu0 0.0
    %72 = vmatpush1.msra.mxu0 %v47
    %73 = vmatprep.subr.mxu0 0.0
    %74 = vmatpush1.msra.mxu0 %v46
    %75 = vmatprep.subr.mxu0 0.0
    %76 = vmatpush1.msra.mxu0 %v45
    %77 = vmatprep.subr.mxu0 0.0
    %78 = vmatpush1.msra.mxu0 %v44
    %79 = vmatprep.subr.mxu0 0.0
    %80 = vmatpush1.msra.mxu0 %v43
    %81 = vmatprep.subr.mxu0 0.0
    %82 = vmatpush1.msra.mxu0 %v42
    %83 = vmatprep.subr.mxu0 0.0
    %84 = vmatpush1.msra.mxu0 %v41
    %85 = vmatprep.subr.mxu0 0.0
    %86 = vmatpush1.msra.mxu0 %v40
    %87 = vmatprep.subr.mxu0 0.0
    %88 = vmatpush2.msra.mxu0 0.0
    %89 = vmatprep.subr.mxu0 0.0
    %90 = vmatpush2.msra.mxu0 0.0
    %91 = vmatprep.subr.mxu0 0.0
    %92 = vmatpush2.msra.mxu0 0.0
    %93 = vmatprep.subr.mxu0 0.0
    %94 = vmatpush2.msra.mxu0 0.0
    %95 = vmatprep.subr.mxu0 0.0
    %96 = vmatpush2.msra.mxu0 0.0
    %97 = vmatprep.subr.mxu0 0.0
    %98 = vmatpush2.msra.mxu0 0.0
    %99 = vmatprep.subr.mxu0 0.0
    %100 = vmatpush2.msra.mxu0 0.0
    %101 = vmatprep.subr.mxu0 0.0
    %102 = vmatpush2.msra.mxu0 0.0
    %103 = vmatprep.subr.mxu0 0.0
    %104 = vmatpush2.msra.mxu0 0.0
    %105 = vmatprep.subr.mxu0 0.0
    %106 = vmatpush2.msra.mxu0 0.0
    %107 = vmatprep.subr.mxu0 0.0
    %108 = vmatpush2.msra.mxu0 0.0
    %109 = vmatprep.subr.mxu0 0.0
    %110 = vmatpush2.msra.mxu0 0.0
    %111 = vmatprep.subr.mxu0 0.0
    %112 = vmatpush2.msra.mxu0 0.0
    %113 = vmatprep.subr.mxu0 0.0
    %114 = vmatpush2.msra.mxu0 0.0
    %115 = vmatprep.subr.mxu0 0.0
    %116 = vmatpush2.msra.mxu0 0.0
    %117 = vmatprep.subr.mxu0 0.0
    %118 = vmatpush2.msra.mxu0 0.0
    %119 = vmatprep.mubr.f32.mxu0 0.0
    %120 = vmatmul.mubr.f32.gmra.mxu0 %v50
    %v121 = vpop.f32.mrf.mxu0
    %v122 = vadd.f32 0.0, %v121
    %v123 = vpop.f32.mrf.mxu0
    %124 = vmatprep.mubr.f32.mxu0 0.0
    %125 = vmatmul.mubr.f32.gmra.mxu0 %v53
    %v126 = vpop.f32.mrf.mxu0
    %v127 = vadd.f32 0.0, %v126
    %v128 = vpop.f32.mrf.mxu0
    %129 = vdwg.mxu0
    %130 = vst [vmem:[#allocation5] sm:$0xff] %v122
    %131 = vst [vmem:[#allocation5 + $0x8] sm:$0xff] %v127
    // Predicated region
    $region14: #{tpu_custom_call.1} parent=1 // pred_check
      _
    $region15: #{tpu_custom_call.1} parent=1 // pred_check_branch
      %133 = sbr.rel (0) target = $region17
    $region16: #{tpu_custom_call.1} parent=1 // pred_region
      %s135 = ssub.s32 256, 256
      %136 = vsyncadd [#allocation4], %s135
      %s137 = sshll.u32 [#allocation5], 4
      %s138 = int_to_ptr.vmem [resolvable:$true] %s137
      %143 = dma.vmem_to_hbm [thread:$0]  %s138, 256, %s2, [#allocation4], 128, 128, 8
    $region17: #{tpu_custom_call.1} parent=1 // pred_fallthru
      _
    // Predicated region
    $region18: #{tpu_custom_call.1} parent=1 // pred_check
      _
    $region19: #{tpu_custom_call.1} parent=1 // pred_check_branch
      %145 = sbr.rel (0) target = $region21
    $region20: #{tpu_custom_call.1} parent=1 // pred_region
      %146 = dma.done [#allocation4], 256
    $region21: #{tpu_custom_call.1} parent=1 // pred_fallthru
      _
    %147 = vsyncpa [#allocation3], 1
    %148 = vsyncpa [#allocation4], 1

</llo_original>
